<compile_context>
chip_gen: v7x
topology: tpu7x:2x2x1
jax: 0.10.0
libtpu: 0.0.40
codegen_flags: <defaults>
</compile_context>

<pallas_src>
import functools
import numpy as np

import jax
import jax.numpy as jnp
from jax.experimental import pallas as pl
from jax.experimental.pallas import tpu as pltpu


def _round_up(x, m):
    return ((x + m - 1) // m) * m


def _triple_index_map(num_fields):
    """(i, j, k) -> position in genotype_3rd (same order as the PyTorch loops)."""
    idx = {}
    t = 0
    for i in range(num_fields - 2):
        for j in range(i + 1, num_fields - 1):
            for k in range(j + 1, num_fields):
                idx[(i, j, k)] = t
                t += 1
    return idx


def _default_compute_dtype():
    """bf16 element math on v6e/v7x; f32 on v5e/v5p/v4 (no packed-bf16 VALU)."""
    try:
        kind = jax.devices()[0].device_kind.lower()
    except Exception:
        return jnp.bfloat16
    if any(tag in kind for tag in ("v2", "v3", "v4", "v5")):
        return jnp.float32
    return jnp.bfloat16


def _choose_tb(b_pad, max_tb, min_blocks=2):
    """Largest multiple of 128 <= max_tb dividing b_pad (b_pad % 128 == 0),
    preferring >= min_blocks grid blocks (v7x megacore sharding)."""
    max_tb = max(128, (int(max_tb) // 128) * 128)     # guard non-128-multiple
    divisors = [c for c in range(128, min(max_tb, b_pad) + 1, 128)
                if b_pad % c == 0]
    multi = [c for c in divisors if b_pad // c >= min_blocks]
    return max(multi) if multi else max(divisors)


# ----------------------------------------------------------------------------
# Pallas kernel: gated FM 2nd/3rd-order interactions + linear term + sigmoid
# ----------------------------------------------------------------------------
def _nasfm_kernel(emb_ref, linw_ref, g2_ref, g3_ref, bias_ref, out_ref,
                  *, num_fields, compute_dtype):
    # emb_ref : (F, D, TB) bf16 VMEM   (batch on lanes)
    # linw_ref: (F, TB)    bf16 VMEM
    # g2_ref  : (T2,)      f32  SMEM
    # g3_ref  : (T3,)      f32  SMEM
    # bias_ref: (1,)       f32  SMEM
    # out_ref : (1, TB)    f32  VMEM   (lane-dense store)
    F = num_fields
    cdt = compute_dtype
    t3_index = _triple_index_map(F)

    # Field accessor.  When the tile dtype equals the compute dtype (bf16 path
    # on v6e/v7x) read lazily at each use -> loads come straight from the
    # pipelined VMEM buffer and vreg pressure stays low.  Otherwise (f32 math
    # on v5e) hoist one upcast per field so the convert is not repeated ~40x.
    if jnp.dtype(emb_ref.dtype) == jnp.dtype(cdt):
        def e(f):
            return emb_ref[f]                                 # (D, TB)
    else:
        _fields = [emb_ref[f].astype(cdt) for f in range(F)]

        def e(f):
            return _fields[f]

    # Gated interactions, prefix-factored:
    #   nasfm = sum_i sum_d e_i * ( sum_{j>i} e_j * (g2_ij + sum_{k>j} g3_ijk*e_k) )
    # Algebraically identical to the PyTorch pair/triple sums.
    nasfm = None                                              # (1, TB) f32
    t2 = 0
    for i in range(F - 1):
        v_i = None                                            # (D, TB) cdt
        for j in range(i + 1, F):
            w_ij = g2_ref[t2].astype(cdt)                     # scalar gate
            t2 += 1
            inner = None                                      # sum_{k>j} g3*e_k
            for k in range(j + 1, F):
                g3 = g3_ref[t3_index[(i, j, k)]].astype(cdt)
                term = g3 * e(k)
                inner = term if inner is None else inner + term
            gate = w_ij if inner is None else w_ij + inner
            ej_term = e(j) * gate
            v_i = ej_term if v_i is None else v_i + ej_term
        # Widen to f32 only for accumulation; reduce over D immediately on the
        # XLU so no (D, TB) f32 accumulator stays live across the i-loop.
        contrib = jnp.sum((e(i) * v_i).astype(jnp.float32), axis=0,
                          keepdims=True)                      # (1, TB)
        nasfm = contrib if nasfm is None else nasfm + contrib

    # Linear term: one axis-0 (sublane) reduce on the XLU + SMEM bias.
    lin = jnp.sum(linw_ref[...].astype(jnp.float32), axis=0, keepdims=True)

    out_ref[...] = jax.nn.sigmoid(lin + bias_ref[0] + nasfm)


def nasfm_pallas(emb, linw, g2, g3, bias, *, max_tb=2048, compute_dtype=None):
    """emb: (F, D, B) activations (bf16), batch on lanes; linw: (F, B).
    Returns sigmoid(linear + gated 2nd/3rd FM) of shape (B,), f32."""
    F, D, B = emb.shape
    if compute_dtype is None:
        compute_dtype = _default_compute_dtype()

    b_pad = _round_up(B, 128)
    if b_pad != B:
        # Fallback only: the model wrapper pads the *index* array before the
        # gather, so this extra HBM pass over the activations never runs.
        emb = jnp.pad(emb, ((0, 0), (0, 0), (0, b_pad - B)))
        linw = jnp.pad(linw, ((0, 0), (0, b_pad - B)))

    tb = _choose_tb(b_pad, max_tb)
    num_blocks = b_pad // tb

    n_pairs = F * (F - 1) // 2
    n_triples = F * (F - 1) * (F - 2) // 6
    per_elem_ops = 2 * (n_pairs + n_triples) + (F - 1)        # ~muls + adds
    cost = pl.CostEstimate(
        flops=b_pad * (D * per_elem_ops + D + F + 4),
        transcendentals=b_pad,                                # sigmoid
        bytes_accessed=(emb.size * emb.dtype.itemsize
                        + linw.size * linw.dtype.itemsize
                        + b_pad * 4
                        + 4 * (g2.size + g3.size + 1)),
    )

    kernel = functools.partial(_nasfm_kernel, num_fields=F,
                               compute_dtype=compute_dtype)
    out = pl.pallas_call(
        kernel,
        out_shape=jax.ShapeDtypeStruct((1, b_pad), jnp.float32),
        grid=(num_blocks,),
        in_specs=[
            pl.BlockSpec((F, D, tb), lambda b: (0, 0, b)),            # emb
            pl.BlockSpec((F, tb), lambda b: (0, b)),                  # linw
            pl.BlockSpec(memory_space=pltpu.MemorySpace.SMEM),        # g2
            pl.BlockSpec(memory_space=pltpu.MemorySpace.SMEM),        # g3
            pl.BlockSpec(memory_space=pltpu.MemorySpace.SMEM),        # bias
        ],
        out_specs=pl.BlockSpec((1, tb), lambda b: (0, b)),
        compiler_params=pltpu.CompilerParams(
            dimension_semantics=("parallel",)),
        cost_estimate=cost,
    )(emb, linw, g2, g3, bias)
    return out[0, :B]                                                 # squeeze(1)


# ----------------------------------------------------------------------------
# Model wrapper (embedding-table gathers are plain-JAX glue; the gather emits
# the kernel's batch-on-lanes layout directly, no transpose / activation pad)
# ----------------------------------------------------------------------------
class NetworkCTRPallas:
    """high_order=True branch of NetworkCTR.  The PyTorch module's self.mlp is
    built in __init__ but never called in forward(), so it is not translated.
    Gathered activations are transferred in bf16 (documented ~1e-3 relative
    deviation vs a strict-f32 PyTorch forward)."""

    def __init__(self, field_dims, embed_dim, key):
        self.field_dims = field_dims
        self.num_fields = len(field_dims)
        self.embed_dim = embed_dim
        total = int(sum(field_dims))
        self.offsets = jnp.asarray(
            np.concatenate([[0], np.cumsum(field_dims)[:-1]]).astype(np.int32))

        F = self.num_fields
        n_pairs = F * (F - 1) // 2
        n_triples = F * (F - 1) * (F - 2) // 6

        k1, k2, k3, k4 = jax.random.split(key, 4)
        # FeaturesEmbedding: Embedding(sum(field_dims), embed_dim)
        self.emb_table = (jax.random.normal(k1, (total, embed_dim), jnp.float32)
                          * 0.1)
        # FeaturesLinear: Embedding(sum(field_dims), 1) + bias
        self.lin_table = (jax.random.normal(k2, (total, 1), jnp.float32) * 0.1)
        self.lin_bias = jnp.zeros((1,), jnp.float32)
        # genotype gates (retrain-stage attention units)
        self.genotype_2nd = jax.random.uniform(k3, (n_pairs,), jnp.float32)
        self.genotype_3rd = jax.random.uniform(k4, (n_triples,), jnp.float32)

        # bf16 transfer copies in gather-friendly flat layouts so the forward
        # gather produces (F, D, B) / (F, B) directly — no materialised
        # transpose or extra HBM pass over the activations.
        self.emb_table_flat_bf16 = (
            self.emb_table.astype(jnp.bfloat16).reshape(-1))          # (total*D,)
        self.lin_table_bf16 = (
            self.lin_table[:, 0].astype(jnp.bfloat16))                # (total,)

    def _gather(self, x):
        # x: (B, F) int32 field-category indices.  Pad the tiny index array
        # (not the gathered activations) so the gather writes the lane-aligned
        # padded layout directly.
        B = x.shape[0]
        b_pad = _round_up(B, 128)
        if b_pad != B:
            x = jnp.pad(x, ((0, b_pad - B), (0, 0)))   # index 0 is always valid
        idx = (x + self.offsets[None, :]).astype(jnp.int32).T         # (F, Bp)
        d = jnp.arange(self.embed_dim, dtype=jnp.int32)
        # Flattened-row gather: output is already (F, D, Bp) bf16.
        # TODO(synk): replace with an in-kernel DMA gather using
        # scalar-prefetched indices to remove this HBM round trip entirely.
        flat_idx = idx[:, None, :] * self.embed_dim + d[None, :, None]
        emb = jnp.take(self.emb_table_flat_bf16, flat_idx, axis=0)    # (F, D, Bp)
        linw = jnp.take(self.lin_table_bf16, idx, axis=0)             # (F, Bp)
        return emb, linw, B

    def __call__(self, x, *, max_tb=2048, compute_dtype=None):
        emb, linw, B = self._gather(x)
        out = nasfm_pallas(emb, linw, self.genotype_2nd, self.genotype_3rd,
                           self.lin_bias, max_tb=max_tb,
                           compute_dtype=compute_dtype)
        return out[:B]

    def reference(self, x):
        # pure-JAX reference mirroring the PyTorch forward (same bf16 transfer
        # quantization of the gathered activations as the kernel path; all
        # interaction math in f32).
        F = self.num_fields
        idx = x + self.offsets[None, :]
        emb = self.emb_table[idx].astype(jnp.bfloat16).astype(jnp.float32)
        linw = self.lin_table[idx][..., 0].astype(jnp.bfloat16).astype(
            jnp.float32)
        row = np.array([i for i in range(F - 1) for _ in range(i + 1, F)])
        col = np.array([j for i in range(F - 1) for j in range(i + 1, F)])
        triples = [(i, j, k) for i in range(F - 2)
                   for j in range(i + 1, F - 1)
                   for k in range(j + 1, F)]
        f1 = np.array([t[0] for t in triples])
        f2 = np.array([t[1] for t in triples])
        f3 = np.array([t[2] for t in triples])
        inner2 = emb[:, row, :] * emb[:, col, :]
        inner3 = emb[:, f1, :] * emb[:, f2, :] * emb[:, f3, :]
        n2 = jnp.sum(jnp.sum(inner2 * self.genotype_2nd[None, :, None], axis=1),
                     axis=1, keepdims=True)
        n3 = jnp.sum(jnp.sum(inner3 * self.genotype_3rd[None, :, None], axis=1),
                     axis=1, keepdims=True)
        lin = jnp.sum(linw, axis=1, keepdims=True) + self.lin_bias[0]
        return jax.nn.sigmoid(lin + n2 + n3)[:, 0]


if __name__ == "__main__":
    key = jax.random.PRNGKey(0)
    field_dims = [7, 11, 13, 5, 9, 8]        # num_fields = 6
    embed_dim = 16
    batch = 8

    kp, kx = jax.random.split(key)
    model = NetworkCTRPallas(field_dims, embed_dim, kp)

    cols = []
    for dim in field_dims:
        kx, sub = jax.random.split(kx)
        cols.append(jax.random.randint(sub, (batch,), 0, dim, jnp.int32))
    x = jnp.stack(cols, axis=1)               # (B, F) int32

    ref = model.reference(x)

    # Strict check: forcing f32 in-kernel math must match the reference tightly
    # (validates the prefix-factored algebra independently of bf16 rounding).
    out_f32 = jax.block_until_ready(model(x, compute_dtype=jnp.float32))
    np.testing.assert_allclose(np.asarray(out_f32), np.asarray(ref),
                               rtol=1e-5, atol=1e-5)

    # Default path (bf16 VALU math on v6e/v7x, f32 on v5e): relaxed tolerance
    # for the bf16 intermediate rounding.
    out = jax.block_until_ready(model(x))
    np.testing.assert_allclose(np.asarray(out), np.asarray(ref),
                               rtol=1e-2, atol=1e-2)

    print("KERNEL_OK")
</pallas_src>

<mosaic_0001>
module attributes {stable_mosaic.version = 11 : i64} {
  func.func @_nasfm_kernel(%arg0: i32, %arg1: memref<6x16x128xbf16, #tpu.memory_space<vmem>>, %arg2: memref<6x128xbf16, #tpu.memory_space<vmem>>, %arg3: memref<15xf32, #tpu.memory_space<smem>>, %arg4: memref<20xf32, #tpu.memory_space<smem>>, %arg5: memref<1xf32, #tpu.memory_space<smem>>, %arg6: memref<1x128xf32, #tpu.memory_space<vmem>>) attributes {dimension_semantics = [#tpu.dimension_semantics<parallel>], iteration_bounds = array<i64: 1>, scalar_prefetch = 0 : i64, scratch_operands = 0 : i64, tpu.core_type = #tpu.core_type<tc>, window_params = [{transform_indices = @transform_0, window_bounds = array<i64: 6, 16, 128>}, {transform_indices = @transform_1, window_bounds = array<i64: 6, 128>}, {transform_indices = @transform_2, window_bounds = array<i64: 15>}, {transform_indices = @transform_3, window_bounds = array<i64: 20>}, {transform_indices = @transform_4, window_bounds = array<i64: 1>}, {transform_indices = @transform_5, window_bounds = array<i64: 1, 128>}]} {
    %c0 = arith.constant 0 : index
    %c0_0 = arith.constant 0 : index
    %c0_1 = arith.constant 0 : index
    %0 = vector.load %arg1[%c0, %c0_0, %c0_1] : memref<6x16x128xbf16, #tpu.memory_space<vmem>>, vector<1x16x128xbf16>
    %1 = vector.shape_cast %0 : vector<1x16x128xbf16> to vector<16x128xbf16>
    %2 = arith.extf %1 : vector<16x128xbf16> to vector<16x128xf32>
    %c1 = arith.constant 1 : index
    %c0_2 = arith.constant 0 : index
    %c0_3 = arith.constant 0 : index
    %3 = vector.load %arg1[%c1, %c0_2, %c0_3] : memref<6x16x128xbf16, #tpu.memory_space<vmem>>, vector<1x16x128xbf16>
    %4 = vector.shape_cast %3 : vector<1x16x128xbf16> to vector<16x128xbf16>
    %5 = arith.extf %4 : vector<16x128xbf16> to vector<16x128xf32>
    %c2 = arith.constant 2 : index
    %c0_4 = arith.constant 0 : index
    %c0_5 = arith.constant 0 : index
    %6 = vector.load %arg1[%c2, %c0_4, %c0_5] : memref<6x16x128xbf16, #tpu.memory_space<vmem>>, vector<1x16x128xbf16>
    %7 = vector.shape_cast %6 : vector<1x16x128xbf16> to vector<16x128xbf16>
    %8 = arith.extf %7 : vector<16x128xbf16> to vector<16x128xf32>
    %c3 = arith.constant 3 : index
    %c0_6 = arith.constant 0 : index
    %c0_7 = arith.constant 0 : index
    %9 = vector.load %arg1[%c3, %c0_6, %c0_7] : memref<6x16x128xbf16, #tpu.memory_space<vmem>>, vector<1x16x128xbf16>
    %10 = vector.shape_cast %9 : vector<1x16x128xbf16> to vector<16x128xbf16>
    %11 = arith.extf %10 : vector<16x128xbf16> to vector<16x128xf32>
    %c4 = arith.constant 4 : index
    %c0_8 = arith.constant 0 : index
    %c0_9 = arith.constant 0 : index
    %12 = vector.load %arg1[%c4, %c0_8, %c0_9] : memref<6x16x128xbf16, #tpu.memory_space<vmem>>, vector<1x16x128xbf16>
    %13 = vector.shape_cast %12 : vector<1x16x128xbf16> to vector<16x128xbf16>
    %14 = arith.extf %13 : vector<16x128xbf16> to vector<16x128xf32>
    %c5 = arith.constant 5 : index
    %c0_10 = arith.constant 0 : index
    %c0_11 = arith.constant 0 : index
    %15 = vector.load %arg1[%c5, %c0_10, %c0_11] : memref<6x16x128xbf16, #tpu.memory_space<vmem>>, vector<1x16x128xbf16>
    %16 = vector.shape_cast %15 : vector<1x16x128xbf16> to vector<16x128xbf16>
    %17 = arith.extf %16 : vector<16x128xbf16> to vector<16x128xf32>
    %c0_12 = arith.constant 0 : index
    %18 = memref.load %arg3[%c0_12] : memref<15xf32, #tpu.memory_space<smem>>
    %c0_13 = arith.constant 0 : index
    %19 = memref.load %arg4[%c0_13] : memref<20xf32, #tpu.memory_space<smem>>
    %20 = vector.broadcast %19 : f32 to vector<16x128xf32>
    %21 = arith.mulf %20, %8 : vector<16x128xf32>
    %c1_14 = arith.constant 1 : index
    %22 = memref.load %arg4[%c1_14] : memref<20xf32, #tpu.memory_space<smem>>
    %23 = vector.broadcast %22 : f32 to vector<16x128xf32>
    %24 = arith.mulf %23, %11 : vector<16x128xf32>
    %25 = arith.addf %21, %24 : vector<16x128xf32>
    %c2_15 = arith.constant 2 : index
    %26 = memref.load %arg4[%c2_15] : memref<20xf32, #tpu.memory_space<smem>>
    %27 = vector.broadcast %26 : f32 to vector<16x128xf32>
    %28 = arith.mulf %27, %14 : vector<16x128xf32>
    %29 = arith.addf %25, %28 : vector<16x128xf32>
    %c3_16 = arith.constant 3 : index
    %30 = memref.load %arg4[%c3_16] : memref<20xf32, #tpu.memory_space<smem>>
    %31 = vector.broadcast %30 : f32 to vector<16x128xf32>
    %32 = arith.mulf %31, %17 : vector<16x128xf32>
    %33 = arith.addf %29, %32 : vector<16x128xf32>
    %34 = vector.broadcast %18 : f32 to vector<16x128xf32>
    %35 = arith.addf %34, %33 : vector<16x128xf32>
    %36 = arith.mulf %5, %35 : vector<16x128xf32>
    %c1_17 = arith.constant 1 : index
    %37 = memref.load %arg3[%c1_17] : memref<15xf32, #tpu.memory_space<smem>>
    %c4_18 = arith.constant 4 : index
    %38 = memref.load %arg4[%c4_18] : memref<20xf32, #tpu.memory_space<smem>>
    %39 = vector.broadcast %38 : f32 to vector<16x128xf32>
    %40 = arith.mulf %39, %11 : vector<16x128xf32>
    %c5_19 = arith.constant 5 : index
    %41 = memref.load %arg4[%c5_19] : memref<20xf32, #tpu.memory_space<smem>>
    %42 = vector.broadcast %41 : f32 to vector<16x128xf32>
    %43 = arith.mulf %42, %14 : vector<16x128xf32>
    %44 = arith.addf %40, %43 : vector<16x128xf32>
    %c6 = arith.constant 6 : index
    %45 = memref.load %arg4[%c6] : memref<20xf32, #tpu.memory_space<smem>>
    %46 = vector.broadcast %45 : f32 to vector<16x128xf32>
    %47 = arith.mulf %46, %17 : vector<16x128xf32>
    %48 = arith.addf %44, %47 : vector<16x128xf32>
    %49 = vector.broadcast %37 : f32 to vector<16x128xf32>
    %50 = arith.addf %49, %48 : vector<16x128xf32>
    %51 = arith.mulf %8, %50 : vector<16x128xf32>
    %52 = arith.addf %36, %51 : vector<16x128xf32>
    %c2_20 = arith.constant 2 : index
    %53 = memref.load %arg3[%c2_20] : memref<15xf32, #tpu.memory_space<smem>>
    %c7 = arith.constant 7 : index
    %54 = memref.load %arg4[%c7] : memref<20xf32, #tpu.memory_space<smem>>
    %55 = vector.broadcast %54 : f32 to vector<16x128xf32>
    %56 = arith.mulf %55, %14 : vector<16x128xf32>
    %c8 = arith.constant 8 : index
    %57 = memref.load %arg4[%c8] : memref<20xf32, #tpu.memory_space<smem>>
    %58 = vector.broadcast %57 : f32 to vector<16x128xf32>
    %59 = arith.mulf %58, %17 : vector<16x128xf32>
    %60 = arith.addf %56, %59 : vector<16x128xf32>
    %61 = vector.broadcast %53 : f32 to vector<16x128xf32>
    %62 = arith.addf %61, %60 : vector<16x128xf32>
    %63 = arith.mulf %11, %62 : vector<16x128xf32>
    %64 = arith.addf %52, %63 : vector<16x128xf32>
    %c3_21 = arith.constant 3 : index
    %65 = memref.load %arg3[%c3_21] : memref<15xf32, #tpu.memory_space<smem>>
    %c9 = arith.constant 9 : index
    %66 = memref.load %arg4[%c9] : memref<20xf32, #tpu.memory_space<smem>>
    %67 = vector.broadcast %66 : f32 to vector<16x128xf32>
    %68 = arith.mulf %67, %17 : vector<16x128xf32>
    %69 = vector.broadcast %65 : f32 to vector<16x128xf32>
    %70 = arith.addf %69, %68 : vector<16x128xf32>
    %71 = arith.mulf %14, %70 : vector<16x128xf32>
    %72 = arith.addf %64, %71 : vector<16x128xf32>
    %c4_22 = arith.constant 4 : index
    %73 = memref.load %arg3[%c4_22] : memref<15xf32, #tpu.memory_space<smem>>
    %74 = vector.broadcast %73 : f32 to vector<16x128xf32>
    %75 = arith.mulf %17, %74 : vector<16x128xf32>
    %76 = arith.addf %72, %75 : vector<16x128xf32>
    %77 = arith.mulf %2, %76 : vector<16x128xf32>
    %cst = arith.constant dense<0.000000e+00> : vector<128xf32>
    %78 = vector.multi_reduction <add>, %77, %cst [0] : vector<16x128xf32> to vector<128xf32>
    %79 = vector.shape_cast %78 : vector<128xf32> to vector<1x128xf32>
    %c5_23 = arith.constant 5 : index
    %80 = memref.load %arg3[%c5_23] : memref<15xf32, #tpu.memory_space<smem>>
    %c10 = arith.constant 10 : index
    %81 = memref.load %arg4[%c10] : memref<20xf32, #tpu.memory_space<smem>>
    %82 = vector.broadcast %81 : f32 to vector<16x128xf32>
    %83 = arith.mulf %82, %11 : vector<16x128xf32>
    %c11 = arith.constant 11 : index
    %84 = memref.load %arg4[%c11] : memref<20xf32, #tpu.memory_space<smem>>
    %85 = vector.broadcast %84 : f32 to vector<16x128xf32>
    %86 = arith.mulf %85, %14 : vector<16x128xf32>
    %87 = arith.addf %83, %86 : vector<16x128xf32>
    %c12 = arith.constant 12 : index
    %88 = memref.load %arg4[%c12] : memref<20xf32, #tpu.memory_space<smem>>
    %89 = vector.broadcast %88 : f32 to vector<16x128xf32>
    %90 = arith.mulf %89, %17 : vector<16x128xf32>
    %91 = arith.addf %87, %90 : vector<16x128xf32>
    %92 = vector.broadcast %80 : f32 to vector<16x128xf32>
    %93 = arith.addf %92, %91 : vector<16x128xf32>
    %94 = arith.mulf %8, %93 : vector<16x128xf32>
    %c6_24 = arith.constant 6 : index
    %95 = memref.load %arg3[%c6_24] : memref<15xf32, #tpu.memory_space<smem>>
    %c13 = arith.constant 13 : index
    %96 = memref.load %arg4[%c13] : memref<20xf32, #tpu.memory_space<smem>>
    %97 = vector.broadcast %96 : f32 to vector<16x128xf32>
    %98 = arith.mulf %97, %14 : vector<16x128xf32>
    %c14 = arith.constant 14 : index
    %99 = memref.load %arg4[%c14] : memref<20xf32, #tpu.memory_space<smem>>
    %100 = vector.broadcast %99 : f32 to vector<16x128xf32>
    %101 = arith.mulf %100, %17 : vector<16x128xf32>
    %102 = arith.addf %98, %101 : vector<16x128xf32>
    %103 = vector.broadcast %95 : f32 to vector<16x128xf32>
    %104 = arith.addf %103, %102 : vector<16x128xf32>
    %105 = arith.mulf %11, %104 : vector<16x128xf32>
    %106 = arith.addf %94, %105 : vector<16x128xf32>
    %c7_25 = arith.constant 7 : index
    %107 = memref.load %arg3[%c7_25] : memref<15xf32, #tpu.memory_space<smem>>
    %c15 = arith.constant 15 : index
    %108 = memref.load %arg4[%c15] : memref<20xf32, #tpu.memory_space<smem>>
    %109 = vector.broadcast %108 : f32 to vector<16x128xf32>
    %110 = arith.mulf %109, %17 : vector<16x128xf32>
    %111 = vector.broadcast %107 : f32 to vector<16x128xf32>
    %112 = arith.addf %111, %110 : vector<16x128xf32>
    %113 = arith.mulf %14, %112 : vector<16x128xf32>
    %114 = arith.addf %106, %113 : vector<16x128xf32>
    %c8_26 = arith.constant 8 : index
    %115 = memref.load %arg3[%c8_26] : memref<15xf32, #tpu.memory_space<smem>>
    %116 = vector.broadcast %115 : f32 to vector<16x128xf32>
    %117 = arith.mulf %17, %116 : vector<16x128xf32>
    %118 = arith.addf %114, %117 : vector<16x128xf32>
    %119 = arith.mulf %5, %118 : vector<16x128xf32>
    %cst_27 = arith.constant dense<0.000000e+00> : vector<128xf32>
    %120 = vector.multi_reduction <add>, %119, %cst_27 [0] : vector<16x128xf32> to vector<128xf32>
    %121 = vector.shape_cast %120 : vector<128xf32> to vector<1x128xf32>
    %122 = arith.addf %79, %121 : vector<1x128xf32>
    %c9_28 = arith.constant 9 : index
    %123 = memref.load %arg3[%c9_28] : memref<15xf32, #tpu.memory_space<smem>>
    %c16 = arith.constant 16 : index
    %124 = memref.load %arg4[%c16] : memref<20xf32, #tpu.memory_space<smem>>
    %125 = vector.broadcast %124 : f32 to vector<16x128xf32>
    %126 = arith.mulf %125, %14 : vector<16x128xf32>
    %c17 = arith.constant 17 : index
    %127 = memref.load %arg4[%c17] : memref<20xf32, #tpu.memory_space<smem>>
    %128 = vector.broadcast %127 : f32 to vector<16x128xf32>
    %129 = arith.mulf %128, %17 : vector<16x128xf32>
    %130 = arith.addf %126, %129 : vector<16x128xf32>
    %131 = vector.broadcast %123 : f32 to vector<16x128xf32>
    %132 = arith.addf %131, %130 : vector<16x128xf32>
    %133 = arith.mulf %11, %132 : vector<16x128xf32>
    %c10_29 = arith.constant 10 : index
    %134 = memref.load %arg3[%c10_29] : memref<15xf32, #tpu.memory_space<smem>>
    %c18 = arith.constant 18 : index
    %135 = memref.load %arg4[%c18] : memref<20xf32, #tpu.memory_space<smem>>
    %136 = vector.broadcast %135 : f32 to vector<16x128xf32>
    %137 = arith.mulf %136, %17 : vector<16x128xf32>
    %138 = vector.broadcast %134 : f32 to vector<16x128xf32>
    %139 = arith.addf %138, %137 : vector<16x128xf32>
    %140 = arith.mulf %14, %139 : vector<16x128xf32>
    %141 = arith.addf %133, %140 : vector<16x128xf32>
    %c11_30 = arith.constant 11 : index
    %142 = memref.load %arg3[%c11_30] : memref<15xf32, #tpu.memory_space<smem>>
    %143 = vector.broadcast %142 : f32 to vector<16x128xf32>
    %144 = arith.mulf %17, %143 : vector<16x128xf32>
    %145 = arith.addf %141, %144 : vector<16x128xf32>
    %146 = arith.mulf %8, %145 : vector<16x128xf32>
    %cst_31 = arith.constant dense<0.000000e+00> : vector<128xf32>
    %147 = vector.multi_reduction <add>, %146, %cst_31 [0] : vector<16x128xf32> to vector<128xf32>
    %148 = vector.shape_cast %147 : vector<128xf32> to vector<1x128xf32>
    %149 = arith.addf %122, %148 : vector<1x128xf32>
    %c12_32 = arith.constant 12 : index
    %150 = memref.load %arg3[%c12_32] : memref<15xf32, #tpu.memory_space<smem>>
    %c19 = arith.constant 19 : index
    %151 = memref.load %arg4[%c19] : memref<20xf32, #tpu.memory_space<smem>>
    %152 = vector.broadcast %151 : f32 to vector<16x128xf32>
    %153 = arith.mulf %152, %17 : vector<16x128xf32>
    %154 = vector.broadcast %150 : f32 to vector<16x128xf32>
    %155 = arith.addf %154, %153 : vector<16x128xf32>
    %156 = arith.mulf %14, %155 : vector<16x128xf32>
    %c13_33 = arith.constant 13 : index
    %157 = memref.load %arg3[%c13_33] : memref<15xf32, #tpu.memory_space<smem>>
    %158 = vector.broadcast %157 : f32 to vector<16x128xf32>
    %159 = arith.mulf %17, %158 : vector<16x128xf32>
    %160 = arith.addf %156, %159 : vector<16x128xf32>
    %161 = arith.mulf %11, %160 : vector<16x128xf32>
    %cst_34 = arith.constant dense<0.000000e+00> : vector<128xf32>
    %162 = vector.multi_reduction <add>, %161, %cst_34 [0] : vector<16x128xf32> to vector<128xf32>
    %163 = vector.shape_cast %162 : vector<128xf32> to vector<1x128xf32>
    %164 = arith.addf %149, %163 : vector<1x128xf32>
    %c14_35 = arith.constant 14 : index
    %165 = memref.load %arg3[%c14_35] : memref<15xf32, #tpu.memory_space<smem>>
    %166 = vector.broadcast %165 : f32 to vector<16x128xf32>
    %167 = arith.mulf %17, %166 : vector<16x128xf32>
    %168 = arith.mulf %14, %167 : vector<16x128xf32>
    %cst_36 = arith.constant dense<0.000000e+00> : vector<128xf32>
    %169 = vector.multi_reduction <add>, %168, %cst_36 [0] : vector<16x128xf32> to vector<128xf32>
    %170 = vector.shape_cast %169 : vector<128xf32> to vector<1x128xf32>
    %171 = arith.addf %164, %170 : vector<1x128xf32>
    %c0_37 = arith.constant 0 : index
    %c0_38 = arith.constant 0 : index
    %172 = vector.load %arg2[%c0_37, %c0_38] : memref<6x128xbf16, #tpu.memory_space<vmem>>, vector<6x128xbf16>
    %173 = arith.extf %172 : vector<6x128xbf16> to vector<6x128xf32>
    %cst_39 = arith.constant dense<0.000000e+00> : vector<128xf32>
    %174 = vector.multi_reduction <add>, %173, %cst_39 [0] : vector<6x128xf32> to vector<128xf32>
    %175 = vector.shape_cast %174 : vector<128xf32> to vector<1x128xf32>
    %c0_40 = arith.constant 0 : index
    %176 = memref.load %arg5[%c0_40] : memref<1xf32, #tpu.memory_space<smem>>
    %177 = vector.broadcast %176 : f32 to vector<1x128xf32>
    %178 = arith.addf %175, %177 : vector<1x128xf32>
    %179 = arith.addf %178, %171 : vector<1x128xf32>
    %180 = arith.negf %179 : vector<1x128xf32>
    %181 = math.exp %180 : vector<1x128xf32>
    %cst_41 = arith.constant 1.000000e+00 : f32
    %182 = vector.broadcast %cst_41 : f32 to vector<1x128xf32>
    %183 = arith.addf %182, %181 : vector<1x128xf32>
    %184 = arith.divf %182, %183 : vector<1x128xf32>
    %c0_42 = arith.constant 0 : index
    %c0_43 = arith.constant 0 : index
    %185 = vector.load %arg6[%c0_42, %c0_43] : memref<1x128xf32, #tpu.memory_space<vmem>>, vector<1x128xf32>
    tpu.vector_store %arg6[%c0_42, %c0_43], %184 {strides = array<i32>} : memref<1x128xf32, #tpu.memory_space<vmem>>, vector<1x128xf32>,
    return
  }
  func.func @transform_0(%arg0: i32) -> (i32, i32, i32) {
    %c0_i32 = arith.constant 0 : i32
    %c0_i32_0 = arith.constant 0 : i32
    %c0_i32_1 = arith.constant 0 : i32
    return %c0_i32, %c0_i32_0, %arg0 : i32, i32, i32
  }
  func.func @transform_1(%arg0: i32) -> (i32, i32) {
    %c0_i32 = arith.constant 0 : i32
    %c0_i32_0 = arith.constant 0 : i32
    return %c0_i32, %arg0 : i32, i32
  }
  func.func @transform_2(%arg0: i32) -> i32 {
    %c0_i32 = arith.constant 0 : i32
    %c0_i32_0 = arith.constant 0 : i32
    return %c0_i32 : i32
  }
  func.func @transform_3(%arg0: i32) -> i32 {
    %c0_i32 = arith.constant 0 : i32
    %c0_i32_0 = arith.constant 0 : i32
    return %c0_i32 : i32
  }
  func.func @transform_4(%arg0: i32) -> i32 {
    %c0_i32 = arith.constant 0 : i32
    %c0_i32_0 = arith.constant 0 : i32
    return %c0_i32 : i32
  }
  func.func @transform_5(%arg0: i32) -> (i32, i32) {
    %c0_i32 = arith.constant 0 : i32
    %c0_i32_0 = arith.constant 0 : i32
    return %c0_i32, %arg0 : i32, i32
  }
}

</mosaic_0001>

<llo_original>
// kernel: tpu_custom_call.1
$region0: #{tpu_custom_call.1}
  #allocation0 [shape = 'u32[]', space=smem, size = 0x4, offset = 0x4, fixed_abs, tag = 'smem constant byte address 0x4 - core index']
  #allocation1 [shape = 'u32[144,128]{1,0:T(1,128)}', space=vmem, size = 0x12000, scoped, tag = 'internal scratch']
  #allocation2 [shape = 'f32[1]{0:T(128)S(6)}', space=smem, size = 0x200, scoped, tag = 'scoped memory for tpu_custom_call.1']
  %s0 = inlined_call_operand.hbm [shape: bf16[6,16,128], index: 0, kind: input, shape index: {}]
  %s1 = inlined_call_operand.vmem [shape: bf16[6,128], index: 1, kind: input, shape index: {}]
  %s2 = inlined_call_operand.vmem [shape: f32[15], index: 2, kind: input, shape index: {}]
  %s3 = inlined_call_operand.vmem [shape: f32[20], index: 3, kind: input, shape index: {}]
  %s4 = inlined_call_operand.<no memory space> [shape: f32[1], index: 4, kind: input, shape index: {}]
  %s5 = inlined_call_operand.hbm [shape: f32[1,128], index: 5, kind: output, shape index: {}]
  %s6 = sld [smem:[#allocation0]]
  $region42: #{tpu_custom_call.1} parent=0
    _
  %s8 = ssub.s32 1, %s6
  %s9 = scalar_select 0, %s8, %s6
  %10 = sst [smem:[#allocation2]] %s4
  $region1: #{tpu_custom_call.1} parent=0
    #allocation3 [shape = 'u8[24576]{0}', space=vmem, size = 0x6000, scoped, tag = 'input window, operand 0, single buffered']
    #allocation4 [shape = 's32[1]{0}', space=sflag, size = 0x4, scoped, tag = 'scoped memory for tpu_custom_call.1']
    #allocation5 [shape = 's32[1]{0}', space=sflag, size = 0x4, scoped, tag = 'scoped memory for tpu_custom_call.1']
    #allocation6 [shape = 's32[1]{0}', space=sflag, size = 0x4, scoped, tag = 'scoped memory for tpu_custom_call.1']
    #allocation7 [shape = 'u8[512]{0}', space=smem, size = 0x200, scoped, tag = 'input window, operand 2, single buffered']
    #allocation8 [shape = 'u8[512]{0}', space=smem, size = 0x200, scoped, tag = 'input window, operand 3, single buffered']
    #allocation9 [shape = 's32[1]{0}', space=sflag, size = 0x4, scoped, tag = 'scoped memory for tpu_custom_call.1']
    #allocation10 [shape = 'u8[512]{0}', space=vmem, size = 0x400, scoped, tag = 'output window, operand 0, single buffered']
    %11 = vsyncpa [#allocation4], 0
    %12 = vsyncpa [#allocation6], 0
    %13 = vsyncpa [#allocation9], 0
    %14 = vsyncpa [#allocation5], 0
    // Predicated region
    $region2: #{tpu_custom_call.1} parent=1 // pred_check
      _
    $region3: #{tpu_custom_call.1} parent=1 // pred_check_branch
      %16 = sbr.rel (0) target = $region5
    $region4: #{tpu_custom_call.1} parent=1 // pred_region
      %s18 = ssub.s32 768, 768
      %19 = vsyncadd [#allocation4], %s18
      %s20 = sshll.u32 [#allocation3], 4
      %s21 = int_to_ptr.vmem [resolvable:$true] %s20
      %26 = dma.hbm_to_vmem [thread:$0]  %s0, 768, %s21, [#allocation4], 64, 64, 4
    $region5: #{tpu_custom_call.1} parent=1 // pred_fallthru
      _
    // Predicated region
    $region6: #{tpu_custom_call.1} parent=1 // pred_check
      _
    $region7: #{tpu_custom_call.1} parent=1 // pred_check_branch
      %28 = sbr.rel (0) target = $region9
    $region8: #{tpu_custom_call.1} parent=1 // pred_region
      _
    $region9: #{tpu_custom_call.1} parent=1 // pred_fallthru
      _
    // Predicated region
    $region10: #{tpu_custom_call.1} parent=1 // pred_check
      _
    $region11: #{tpu_custom_call.1} parent=1 // pred_check_branch
      %30 = sbr.rel (0) target = $region13
    $region12: #{tpu_custom_call.1} parent=1 // pred_region
      %s32 = ssub.s32 16, 16
      %33 = vsyncadd [#allocation6], %s32
      %s35 = sshll.u32 %s2, 4
      %s36 = int_to_ptr.vmem [resolvable:$true] %s35
      %38 = dma.vmem_to_smem %s36, 16, [#allocation7], [#allocation6]
    $region13: #{tpu_custom_call.1} parent=1 // pred_fallthru
      _
    // Predicated region
    $region14: #{tpu_custom_call.1} parent=1 // pred_check
      _
    $region15: #{tpu_custom_call.1} parent=1 // pred_check_branch
      %40 = sbr.rel (0) target = $region17
    $region16: #{tpu_custom_call.1} parent=1 // pred_region
      %s42 = ssub.s32 16, 16
      %43 = vsyncadd [#allocation9], %s42
      %s45 = sshll.u32 %s3, 4
      %s46 = int_to_ptr.vmem [resolvable:$true] %s45
      %48 = dma.vmem_to_smem %s46, 16, [#allocation8], [#allocation9]
    $region17: #{tpu_custom_call.1} parent=1 // pred_fallthru
      _
    // Predicated region
    $region18: #{tpu_custom_call.1} parent=1 // pred_check
      _
    $region19: #{tpu_custom_call.1} parent=1 // pred_check_branch
      %50 = sbr.rel (0) target = $region21
    $region20: #{tpu_custom_call.1} parent=1 // pred_region
      _
    $region21: #{tpu_custom_call.1} parent=1 // pred_fallthru
      _
    // Predicated region
    $region22: #{tpu_custom_call.1} parent=1 // pred_check
      _
    $region23: #{tpu_custom_call.1} parent=1 // pred_check_branch
      %52 = sbr.rel (0) target = $region25
    $region24: #{tpu_custom_call.1} parent=1 // pred_region
      %53 = dma.done [#allocation4], 768
    $region25: #{tpu_custom_call.1} parent=1 // pred_fallthru
      _
    // Predicated region
    $region26: #{tpu_custom_call.1} parent=1 // pred_check
      _
    $region27: #{tpu_custom_call.1} parent=1 // pred_check_branch
      %55 = sbr.rel (0) target = $region29
    $region28: #{tpu_custom_call.1} parent=1 // pred_region
      %56 = dma.done [#allocation6], 16
    $region29: #{tpu_custom_call.1} parent=1 // pred_fallthru
      _
    // Predicated region
    $region30: #{tpu_custom_call.1} parent=1 // pred_check
      _
    $region31: #{tpu_custom_call.1} parent=1 // pred_check_branch
      %58 = sbr.rel (0) target = $region33
    $region32: #{tpu_custom_call.1} parent=1 // pred_region
      %59 = dma.done [#allocation9], 16
    $region33: #{tpu_custom_call.1} parent=1 // pred_fallthru
      _
    %60 = sfence
    %v61 = vld [vmem:[#allocation3] sm:$0xf]
    %v62 = vld [vmem:[#allocation3 + $0x4] sm:$0xf]
    %v63 = vunpack.c.l.bf16 %v61
    %v64 = vunpack.c.l.bf16 %v62
    %s65 = scalar_lea.vmem [#allocation3], 8
    %v66 = vld [vmem:[%s65] sm:$0xf]
    %v67 = vld [vmem:[%s65 + $0x4] sm:$0xf]
    %v68 = vunpack.c.l.bf16 %v66
    %v69 = vunpack.c.l.bf16 %v67
    %s70 = scalar_lea.vmem [#allocation3], 16
    %v71 = vld [vmem:[%s70] sm:$0xf]
    %v72 = vld [vmem:[%s70 + $0x4] sm:$0xf]
    %v73 = vunpack.c.l.bf16 %v71
    %v74 = vunpack.c.l.bf16 %v72
    %s75 = scalar_lea.vmem [#allocation3], 24
    %v76 = vld [vmem:[%s75] sm:$0xf]
    %v77 = vld [vmem:[%s75 + $0x4] sm:$0xf]
    %v78 = vunpack.c.l.bf16 %v76
    %v79 = vunpack.c.l.bf16 %v77
    %s80 = scalar_lea.vmem [#allocation3], 32
    %v81 = vld [vmem:[%s80] sm:$0xf]
    %v82 = vld [vmem:[%s80 + $0x4] sm:$0xf]
    %v83 = vunpack.c.l.bf16 %v81
    %v84 = vunpack.c.l.bf16 %v82
    %s85 = scalar_lea.vmem [#allocation3], 40
    %v86 = vld [vmem:[%s85] sm:$0xf]
    %v87 = vld [vmem:[%s85 + $0x4] sm:$0xf]
    %v88 = vunpack.c.l.bf16 %v86
    %v89 = vunpack.c.l.bf16 %v87
    %s90 = sld [smem:[#allocation7]]
    %s91 = sld [smem:[#allocation8]]
    %v92 = vstv %s91
    %v93 = vmul.f32 %v92, %v73
    %v94 = vmul.f32 %v92, %v74
    %s95 = sld [smem:[#allocation8 + $0x1]]
    %v96 = vstv %s95
    %v97 = vmul.f32 %v96, %v78
    %v98 = vmul.f32 %v96, %v79
    %v99 = vadd.f32 %v93, %v97
    %v100 = vadd.f32 %v94, %v98
    %s101 = sld [smem:[#allocation8 + $0x2]]
    %v102 = vstv %s101
    %v103 = vmul.f32 %v102, %v83
    %v104 = vmul.f32 %v102, %v84
    %v105 = vadd.f32 %v99, %v103
    %v106 = vadd.f32 %v100, %v104
    %s107 = sld [smem:[#allocation8 + $0x3]]
    %v108 = vstv %s107
    %v109 = vmul.f32 %v108, %v88
    %v110 = vmul.f32 %v108, %v89
    %v111 = vadd.f32 %v105, %v109
    %v112 = vadd.f32 %v106, %v110
    %v113 = vstv %s90
    %v114 = vadd.f32 %v113, %v111
    %v115 = vadd.f32 %v113, %v112
    %v116 = vmul.f32 %v68, %v114
    %v117 = vmul.f32 %v69, %v115
    %s118 = sld [smem:[#allocation7 + $0x1]]
    %s119 = sld [smem:[#allocation8 + $0x4]]
    %v120 = vstv %s119
    %v121 = vmul.f32 %v120, %v78
    %v122 = vmul.f32 %v120, %v79
    %s123 = sld [smem:[#allocation8 + $0x5]]
    %v124 = vstv %s123
    %v125 = vmul.f32 %v124, %v83
    %v126 = vmul.f32 %v124, %v84
    %v127 = vadd.f32 %v121, %v125
    %v128 = vadd.f32 %v122, %v126
    %s129 = sld [smem:[#allocation8 + $0x6]]
    %v130 = vstv %s129
    %v131 = vmul.f32 %v130, %v88
    %v132 = vmul.f32 %v130, %v89
    %v133 = vadd.f32 %v127, %v131
    %v134 = vadd.f32 %v128, %v132
    %v135 = vstv %s118
    %v136 = vadd.f32 %v135, %v133
    %v137 = vadd.f32 %v135, %v134
    %v138 = vmul.f32 %v73, %v136
    %v139 = vmul.f32 %v74, %v137
    %v140 = vadd.f32 %v116, %v138
    %v141 = vadd.f32 %v117, %v139
    %s142 = sld [smem:[#allocation7 + $0x2]]
    %s143 = sld [smem:[#allocation8 + $0x7]]
    %v144 = vstv %s143
    %v145 = vmul.f32 %v144, %v83
    %v146 = vmul.f32 %v144, %v84
    %s147 = sld [smem:[#allocation8 + $0x8]]
    %v148 = vstv %s147
    %v149 = vmul.f32 %v148, %v88
    %v150 = vmul.f32 %v148, %v89
    %v151 = vadd.f32 %v145, %v149
    %v152 = vadd.f32 %v146, %v150
    %v153 = vstv %s142
    %v154 = vadd.f32 %v153, %v151
    %v155 = vadd.f32 %v153, %v152
    %v156 = vmul.f32 %v78, %v154
    %v157 = vmul.f32 %v79, %v155
    %v158 = vadd.f32 %v140, %v156
    %v159 = vadd.f32 %v141, %v157
    %s160 = sld [smem:[#allocation7 + $0x3]]
    %s161 = sld [smem:[#allocation8 + $0x9]]
    %v162 = vstv %s161
    %v163 = vmul.f32 %v162, %v88
    %v164 = vmul.f32 %v162, %v89
    %v165 = vstv %s160
    %v166 = vadd.f32 %v165, %v163
    %v167 = vadd.f32 %v165, %v164
    %v168 = vmul.f32 %v83, %v166
    %v169 = vmul.f32 %v84, %v167
    %v170 = vadd.f32 %v158, %v168
    %v171 = vadd.f32 %v159, %v169
    %s172 = sld [smem:[#allocation7 + $0x4]]
    %v173 = vstv %s172
    %v174 = vmul.f32 %v88, %v173
    %v175 = vmul.f32 %v89, %v173
    %v176 = vadd.f32 %v170, %v174
    %v177 = vadd.f32 %v171, %v175
    %v178 = vmul.f32 %v63, %v176
    %v179 = vmul.f32 %v64, %v177
    %v180 = vadd.f32 %v178, %v179
    %v181 = vrot.slane %v180, 4
    %v182 = vadd.f32 %v180, %v181
    %v183 = vrot.slane %v182, 2
    %v184 = vadd.f32 %v182, %v183
    %v185 = vrot.slane %v184, 1
    %v186 = vadd.f32 %v184, %v185
    %s187 = sld [smem:[#allocation7 + $0x5]]
    %s188 = sld [smem:[#allocation8 + $0xa]]
    %v189 = vstv %s188
    %v190 = vmul.f32 %v189, %v78
    %v191 = vmul.f32 %v189, %v79
    %s192 = sld [smem:[#allocation8 + $0xb]]
    %v193 = vstv %s192
    %v194 = vmul.f32 %v193, %v83
    %v195 = vmul.f32 %v193, %v84
    %v196 = vadd.f32 %v190, %v194
    %v197 = vadd.f32 %v191, %v195
    %s198 = sld [smem:[#allocation8 + $0xc]]
    %v199 = vstv %s198
    %v200 = vmul.f32 %v199, %v88
    %v201 = vmul.f32 %v199, %v89
    %v202 = vadd.f32 %v196, %v200
    %v203 = vadd.f32 %v197, %v201
    %v204 = vstv %s187
    %v205 = vadd.f32 %v204, %v202
    %v206 = vadd.f32 %v204, %v203
    %v207 = vmul.f32 %v73, %v205
    %v208 = vmul.f32 %v74, %v206
    %s209 = sld [smem:[#allocation7 + $0x6]]
    %s210 = sld [smem:[#allocation8 + $0xd]]
    %v211 = vstv %s210
    %v212 = vmul.f32 %v211, %v83
    %v213 = vmul.f32 %v211, %v84
    %s214 = sld [smem:[#allocation8 + $0xe]]
    %v215 = vstv %s214
    %v216 = vmul.f32 %v215, %v88
    %v217 = vmul.f32 %v215, %v89
    %v218 = vadd.f32 %v212, %v216
    %v219 = vadd.f32 %v213, %v217
    %v220 = vstv %s209
    %v221 = vadd.f32 %v220, %v218
    %v222 = vadd.f32 %v220, %v219
    %v223 = vmul.f32 %v78, %v221
    %v224 = vmul.f32 %v79, %v222
    %v225 = vadd.f32 %v207, %v223
    %v226 = vadd.f32 %v208, %v224
    %s227 = sld [smem:[#allocation7 + $0x7]]
    %s228 = sld [smem:[#allocation8 + $0xf]]
    %v229 = vstv %s228
    %v230 = vmul.f32 %v229, %v88
    %v231 = vmul.f32 %v229, %v89
    %v232 = vstv %s227
    %v233 = vadd.f32 %v232, %v230
    %v234 = vadd.f32 %v232, %v231
    %v235 = vmul.f32 %v83, %v233
    %v236 = vmul.f32 %v84, %v234
    %v237 = vadd.f32 %v225, %v235
    %v238 = vadd.f32 %v226, %v236
    %s239 = sld [smem:[#allocation7 + $0x8]]
    %v240 = vstv %s239
    %v241 = vmul.f32 %v88, %v240
    %v242 = vmul.f32 %v89, %v240
    %v243 = vadd.f32 %v237, %v241
    %v244 = vadd.f32 %v238, %v242
    %v245 = vmul.f32 %v68, %v243
    %v246 = vmul.f32 %v69, %v244
    %v247 = vadd.f32 %v245, %v246
    %v248 = vrot.slane %v247, 4
    %v249 = vadd.f32 %v247, %v248
    %v250 = vrot.slane %v249, 2
    %v251 = vadd.f32 %v249, %v250
    %v252 = vrot.slane %v251, 1
    %v253 = vadd.f32 %v251, %v252
    %v254 = vadd.f32 %v186, %v253
    %s255 = sld [smem:[#allocation7 + $0x9]]
    %s256 = sld [smem:[#allocation8 + $0x10]]
    %v257 = vstv %s256
    %v258 = vmul.f32 %v257, %v83
    %v259 = vmul.f32 %v257, %v84
    %s260 = sld [smem:[#allocation8 + $0x11]]
    %v261 = vstv %s260
    %v262 = vmul.f32 %v261, %v88
    %v263 = vmul.f32 %v261, %v89
    %v264 = vadd.f32 %v258, %v262
    %v265 = vadd.f32 %v259, %v263
    %v266 = vstv %s255
    %v267 = vadd.f32 %v266, %v264
    %v268 = vadd.f32 %v266, %v265
    %v269 = vmul.f32 %v78, %v267
    %v270 = vmul.f32 %v79, %v268
    %s271 = sld [smem:[#allocation7 + $0xa]]
    %s272 = sld [smem:[#allocation8 + $0x12]]
    %v273 = vstv %s272
    %v274 = vmul.f32 %v273, %v88
    %v275 = vmul.f32 %v273, %v89
    %v276 = vstv %s271
    %v277 = vadd.f32 %v276, %v274
    %v278 = vadd.f32 %v276, %v275
    %v279 = vmul.f32 %v83, %v277
    %v280 = vmul.f32 %v84, %v278
    %v281 = vadd.f32 %v269, %v279
    %v282 = vadd.f32 %v270, %v280
    %s283 = sld [smem:[#allocation7 + $0xb]]
    %v284 = vstv %s283
    %v285 = vmul.f32 %v88, %v284
    %v286 = vmul.f32 %v89, %v284
    %v287 = vadd.f32 %v281, %v285
    %v288 = vadd.f32 %v282, %v286
    %v289 = vmul.f32 %v73, %v287
    %v290 = vmul.f32 %v74, %v288
    %v291 = vadd.f32 %v289, %v290
    %v292 = vrot.slane %v291, 4
    %v293 = vadd.f32 %v291, %v292
    %v294 = vrot.slane %v293, 2
    %v295 = vadd.f32 %v293, %v294
    %v296 = vrot.slane %v295, 1
    %v297 = vadd.f32 %v295, %v296
    %v298 = vadd.f32 %v254, %v297
    %s299 = sld [smem:[#allocation7 + $0xc]]
    %s300 = sld [smem:[#allocation8 + $0x13]]
    %v301 = vstv %s300
    %v302 = vmul.f32 %v301, %v88
    %v303 = vmul.f32 %v301, %v89
    %v304 = vstv %s299
    %v305 = vadd.f32 %v304, %v302
    %v306 = vadd.f32 %v304, %v303
    %v307 = vmul.f32 %v83, %v305
    %v308 = vmul.f32 %v84, %v306
    %s309 = sld [smem:[#allocation7 + $0xd]]
    %v310 = vstv %s309
    %v311 = vmul.f32 %v88, %v310
    %v312 = vmul.f32 %v89, %v310
    %v313 = vadd.f32 %v307, %v311
    %v314 = vadd.f32 %v308, %v312
    %v315 = vmul.f32 %v78, %v313
    %v316 = vmul.f32 %v79, %v314
    %v317 = vadd.f32 %v315, %v316
    %v318 = vrot.slane %v317, 4
    %v319 = vadd.f32 %v317, %v318
    %v320 = vrot.slane %v319, 2
    %v321 = vadd.f32 %v319, %v320
    %v322 = vrot.slane %v321, 1
    %v323 = vadd.f32 %v321, %v322
    %v324 = vadd.f32 %v298, %v323
    %s325 = sld [smem:[#allocation7 + $0xe]]
    %v326 = vstv %s325
    %v327 = vmul.f32 %v88, %v326
    %v328 = vmul.f32 %v89, %v326
    %v329 = vmul.f32 %v83, %v327
    %v330 = vmul.f32 %v84, %v328
    %v331 = vadd.f32 %v329, %v330
    %v332 = vrot.slane %v331, 4
    %v333 = vadd.f32 %v331, %v332
    %v334 = vrot.slane %v333, 2
    %v335 = vadd.f32 %v333, %v334
    %v336 = vrot.slane %v335, 1
    %v337 = vadd.f32 %v335, %v336
    %v338 = vadd.f32 %v324, %v337
    %v339 = vld [vmem:[%s1] sm:$0x7]
    %v340 = vunpack.c.l.bf16 %v339
    %vm341 = vcmask 1045504
    %v342 = vsel %vm341, %v340, 0.0
    %v343 = vrot.slane %v342, 4
    %v344 = vadd.f32 %v342, %v343
    %v345 = vrot.slane %v344, 2
    %v346 = vadd.f32 %v344, %v345
    %v347 = vrot.slane %v346, 1
    %v348 = vadd.f32 %v346, %v347
    %s349 = sld [smem:[#allocation2]]
    %v350 = vstv %s349
    %v351 = vadd.f32 %v348, %v350
    %v352 = vadd.f32 %v351, %v338
    %v353 = vxor.u32 %v352, 2147483648
    %v354 = vmul.f32 %v353, 1.442695
    %v355 = vpow.pop %v354
    %v356 = vadd.f32 %v355, 1.0
    %v357 = vrcp.pop %v356
    %v358 = vmul.f32 1.0, %v357
    %359 = vst [vmem:[#allocation10] sm:$0x1] %v358
    // Predicated region
    $region34: #{tpu_custom_call.1} parent=1 // pred_check
      _
    $region35: #{tpu_custom_call.1} parent=1 // pred_check_branch
      %361 = sbr.rel (0) target = $region37
    $region36: #{tpu_custom_call.1} parent=1 // pred_region
      %s363 = ssub.s32 16, 16
      %364 = vsyncadd [#allocation5], %s363
      %s366 = sshll.u32 [#allocation10], 4
      %s367 = int_to_ptr.vmem [resolvable:$true] %s366
      %369 = dma.vmem_to_hbm [thread:$0]  %s367, 16, %s5, [#allocation5]
    $region37: #{tpu_custom_call.1} parent=1 // pred_fallthru
      _
    // Predicated region
    $region38: #{tpu_custom_call.1} parent=1 // pred_check
      _
    $region39: #{tpu_custom_call.1} parent=1 // pred_check_branch
      %371 = sbr.rel (0) target = $region41
    $region40: #{tpu_custom_call.1} parent=1 // pred_region
      %372 = dma.done [#allocation5], 16
    $region41: #{tpu_custom_call.1} parent=1 // pred_fallthru
      _
    %373 = vsyncpa [#allocation4], 1
    %374 = vsyncpa [#allocation5], 1
    %375 = vsyncpa [#allocation6], 1
    %376 = vsyncpa [#allocation9], 1

</llo_original>
